<compile_context>
chip_gen: v7x
topology: tpu7x:2x2x1
jax: 0.10.0
libtpu: 0.0.40
codegen_flags: <defaults>
</compile_context>

<pallas_src>
import jax
import jax.numpy as jnp
from jax.experimental import pallas as pl
from jax.experimental.pallas import tpu as pltpu


def _round_up(a, b):
    return ((a + b - 1) // b) * b


def _round_down(a, b):
    return (a // b) * b


def _scaled_sigmoid_kernel(scale_ref, x_ref, o_ref):
    # out = scale * sigmoid(-x) == (0.5*scale) * (1 - tanh(x/2))
    # One EUP op (tanh) + VPU mul/sub per element; compute in f32 in-vreg.
    x = x_ref[...].astype(jnp.float32)
    scale = scale_ref[0, 0]
    y = (0.5 * scale) * (1.0 - jnp.tanh(0.5 * x))
    o_ref[...] = y.astype(o_ref.dtype)


def _pick_lane_width(n):
    # Largest lane-dense width that divides n -> no padding at all.
    for c in (512, 256, 128):
        if n % c == 0:
            return c, False
    # Fallback: pad the ragged tail of the last 128-wide row (<128 elems).
    return 128, True


def _target_block_bytes():
    # ~2 MiB blocks keep per-step overhead <20% at v5e/v6e HBM bandwidth;
    # ~4 MiB on v7x (3.2 TB/s) halves the per-step overhead tax.
    try:
        kind = jax.devices()[0].device_kind.lower()
    except Exception:
        kind = ""
    return 4 * 1024 * 1024 if "v7" in kind else 2 * 1024 * 1024


def scaled_sigmoid(x, sigmoid_mask_scale):
    """Applies sigmoid_mask_scale * sigmoid(-x) elementwise (Pallas TPU)."""
    orig_shape = x.shape
    n = x.size
    if n == 0:
        return x

    itemsize = jnp.dtype(x.dtype).itemsize
    # Sublane packing multiple: 8 for 4-byte dtypes, 16 for bf16, 32 for int8/fp8.
    sub = max(8, 32 // itemsize)

    c, needs_pad = _pick_lane_width(n)
    rows = pl.cdiv(n, c)

    flat = x.reshape(-1)
    if needs_pad:
        flat = jnp.pad(flat, (0, rows * c - n))  # <128 elements of padding
    x2d = flat.reshape(rows, c)

    # Row tile sized from the target block bytes.
    row_tile = max(sub, _round_down(_target_block_bytes() // (c * itemsize), sub))

    if rows <= row_tile:
        if rows >= 4 * sub:
            # Keep >=~4 blocks so the "parallel" axis can shard across both
            # TensorCores on v7x instead of collapsing to one block.
            tile = _round_up(pl.cdiv(rows, 4), sub)
        else:
            # Single block covering the full array (full-extent block shapes
            # are always legal, even when not (8,128)-aligned).
            tile = rows
    else:
        tile = row_tile

    grid = (pl.cdiv(rows, tile),)  # ragged last block handled by Pallas

    scale = jnp.asarray(sigmoid_mask_scale, dtype=jnp.float32).reshape(1, 1)

    cost = pl.CostEstimate(
        flops=3 * n,
        transcendentals=n,
        bytes_accessed=2 * n * itemsize,
    )

    out2d = pl.pallas_call(
        _scaled_sigmoid_kernel,
        out_shape=jax.ShapeDtypeStruct((rows, c), x.dtype),
        grid_spec=pltpu.PrefetchScalarGridSpec(
            num_scalar_prefetch=0,
            grid=grid,
            in_specs=[
                pl.BlockSpec(memory_space=pltpu.MemorySpace.SMEM),  # scale (1,1)
                pl.BlockSpec((tile, c), lambda i: (i, 0)),          # x tile
            ],
            out_specs=pl.BlockSpec((tile, c), lambda i: (i, 0)),
        ),
        compiler_params=pltpu.CompilerParams(
            dimension_semantics=("parallel",),
            # Explicit cap: above v5e's 16 MiB scoped default, comfortably
            # below physical VMEM on all of v5e/v6e (128 MiB) and v7x (64 MiB).
            vmem_limit_bytes=32 * 1024 * 1024,
            # Let XLA fuse the (rare) pad/reshape producer into the input DMA
            # instead of materializing a padded HBM buffer.
            allow_input_fusion=[False, True],
        ),
        cost_estimate=cost,
    )(scale, x2d)

    out_flat = out2d.reshape(-1)
    if needs_pad:
        out_flat = out_flat[:n]
    return out_flat.reshape(orig_shape)


if __name__ == "__main__":
    # Deterministic "parameter": the sigmoid mask scale (as used in MrT5).
    sigmoid_mask_scale = -10.0

    key = jax.random.PRNGKey(0)
    batch, seq, hidden = 2, 8, 32
    x = jax.random.normal(key, (batch, seq, hidden), dtype=jnp.float32)

    out = jax.block_until_ready(scaled_sigmoid(x, sigmoid_mask_scale))
    ref = sigmoid_mask_scale * jax.nn.sigmoid(-x)
    assert out.shape == x.shape and out.dtype == x.dtype
    assert jnp.allclose(out, ref, atol=1e-5, rtol=1e-5)

    # Also exercise the ragged fallback path (n % 128 != 0).
    x2 = jax.random.normal(jax.random.PRNGKey(1), (2, 7, 13), dtype=jnp.float32)
    out2 = jax.block_until_ready(scaled_sigmoid(x2, sigmoid_mask_scale))
    ref2 = sigmoid_mask_scale * jax.nn.sigmoid(-x2)
    assert out2.shape == x2.shape and out2.dtype == x2.dtype
    assert jnp.allclose(out2, ref2, atol=1e-5, rtol=1e-5)

    print("KERNEL_OK")
</pallas_src>

<mosaic_0001>
module attributes {stable_mosaic.version = 11 : i64} {
  func.func @_scaled_sigmoid_kernel(%arg0: i32, %arg1: memref<1x1xf32, #tpu.memory_space<smem>>, %arg2: memref<1x512xf32, #tpu.memory_space<vmem>>, %arg3: memref<1x512xf32, #tpu.memory_space<vmem>>) attributes {dimension_semantics = [#tpu.dimension_semantics<parallel>], iteration_bounds = array<i64: 1>, scalar_prefetch = 0 : i64, scratch_operands = 0 : i64, tpu.core_type = #tpu.core_type<tc>, window_params = [{transform_indices = @transform_0, window_bounds = array<i64: 1, 1>}, {transform_indices = @transform_1, window_bounds = array<i64: 1, 512>}, {transform_indices = @transform_2, window_bounds = array<i64: 1, 512>}]} {
    %c0 = arith.constant 0 : index
    %c0_0 = arith.constant 0 : index
    %0 = vector.load %arg2[%c0, %c0_0] : memref<1x512xf32, #tpu.memory_space<vmem>>, vector<1x512xf32>
    %c0_1 = arith.constant 0 : index
    %c0_2 = arith.constant 0 : index
    %1 = memref.load %arg1[%c0_1, %c0_2] : memref<1x1xf32, #tpu.memory_space<smem>>
    %cst = arith.constant 5.000000e-01 : f32
    %2 = arith.mulf %cst, %1 : f32
    %cst_3 = arith.constant 5.000000e-01 : f32
    %3 = vector.broadcast %cst_3 : f32 to vector<1x512xf32>
    %4 = arith.mulf %3, %0 : vector<1x512xf32>
    %5 = math.tanh %4 : vector<1x512xf32>
    %cst_4 = arith.constant 1.000000e+00 : f32
    %6 = vector.broadcast %cst_4 : f32 to vector<1x512xf32>
    %7 = arith.subf %6, %5 : vector<1x512xf32>
    %8 = vector.broadcast %2 : f32 to vector<1x512xf32>
    %9 = arith.mulf %8, %7 : vector<1x512xf32>
    %c0_5 = arith.constant 0 : index
    %c0_6 = arith.constant 0 : index
    %10 = vector.load %arg3[%c0_5, %c0_6] : memref<1x512xf32, #tpu.memory_space<vmem>>, vector<1x512xf32>
    tpu.vector_store %arg3[%c0_5, %c0_6], %9 {strides = array<i32>} : memref<1x512xf32, #tpu.memory_space<vmem>>, vector<1x512xf32>,
    return
  }
  func.func @transform_0(%arg0: i32) -> (i32, i32) {
    %c0_i32 = arith.constant 0 : i32
    %c0_i32_0 = arith.constant 0 : i32
    %c0_i32_1 = arith.constant 0 : i32
    return %c0_i32, %c0_i32_0 : i32, i32
  }
  func.func @transform_1(%arg0: i32) -> (i32, i32) {
    %c0_i32 = arith.constant 0 : i32
    %c0_i32_0 = arith.constant 0 : i32
    return %arg0, %c0_i32 : i32, i32
  }
  func.func @transform_2(%arg0: i32) -> (i32, i32) {
    %c0_i32 = arith.constant 0 : i32
    %c0_i32_0 = arith.constant 0 : i32
    return %arg0, %c0_i32 : i32, i32
  }
}

</mosaic_0001>

<llo_original>
// kernel: tpu_custom_call.1
$region0: #{tpu_custom_call.1}
  #allocation0 [shape = 'u32[]', space=smem, size = 0x4, offset = 0x4, fixed_abs, tag = 'smem constant byte address 0x4 - core index']
  #allocation1 [shape = 'u32[144,128]{1,0:T(1,128)}', space=vmem, size = 0x12000, scoped, tag = 'internal scratch']
  #allocation2 [shape = 'f32[1,1]{1,0:T(1,128)S(6)}', space=smem, size = 0x200, scoped, tag = 'scoped memory for tpu_custom_call.1']
  %s0 = inlined_call_operand.<no memory space> [shape: f32[1,1], index: 0, kind: input, shape index: {}]
  %s1 = inlined_call_operand.hbm [shape: f32[1,512], index: 1, kind: input, shape index: {}]
  %s2 = inlined_call_operand.hbm [shape: f32[1,512], index: 2, kind: output, shape index: {}]
  %s3 = sld [smem:[#allocation0]]
  $region22: #{tpu_custom_call.1} parent=0
    _
  %s5 = ssub.s32 1, %s3
  %s6 = scalar_select 0, %s5, %s3
  %7 = sst [smem:[#allocation2]] %s0
  $region1: #{tpu_custom_call.1} parent=0
    #allocation3 [shape = 'u8[2048]{0}', space=vmem, size = 0x800, scoped, tag = 'input window, operand 1, single buffered']
    #allocation4 [shape = 's32[1]{0}', space=sflag, size = 0x4, scoped, tag = 'scoped memory for tpu_custom_call.1']
    #allocation5 [shape = 's32[1]{0}', space=sflag, size = 0x4, scoped, tag = 'scoped memory for tpu_custom_call.1']
    #allocation6 [shape = 'u8[2048]{0}', space=vmem, size = 0x800, scoped, tag = 'output window, operand 0, single buffered']
    %8 = vsyncpa [#allocation4], 0
    %9 = vsyncpa [#allocation5], 0
    // Predicated region
    $region2: #{tpu_custom_call.1} parent=1 // pred_check
      _
    $region3: #{tpu_custom_call.1} parent=1 // pred_check_branch
      %11 = sbr.rel (0) target = $region5
    $region4: #{tpu_custom_call.1} parent=1 // pred_region
      _
    $region5: #{tpu_custom_call.1} parent=1 // pred_fallthru
      _
    // Predicated region
    $region6: #{tpu_custom_call.1} parent=1 // pred_check
      _
    $region7: #{tpu_custom_call.1} parent=1 // pred_check_branch
      %13 = sbr.rel (0) target = $region9
    $region8: #{tpu_custom_call.1} parent=1 // pred_region
      %s15 = ssub.s32 64, 64
      %16 = vsyncadd [#allocation4], %s15
      %s18 = sshll.u32 [#allocation3], 4
      %s19 = int_to_ptr.vmem [resolvable:$true] %s18
      %21 = dma.hbm_to_vmem [thread:$0]  %s1, 64, %s19, [#allocation4]
    $region9: #{tpu_custom_call.1} parent=1 // pred_fallthru
      _
    // Predicated region
    $region10: #{tpu_custom_call.1} parent=1 // pred_check
      _
    $region11: #{tpu_custom_call.1} parent=1 // pred_check_branch
      %23 = sbr.rel (0) target = $region13
    $region12: #{tpu_custom_call.1} parent=1 // pred_region
      %24 = dma.done [#allocation4], 64
    $region13: #{tpu_custom_call.1} parent=1 // pred_fallthru
      _
    %v25 = vld [vmem:[#allocation3] sm:$0xf]
    %s26 = sld [smem:[#allocation2]]
    %s27 = smul.f32 %s26, 0.5
    %v28 = vmul.f32 %v25, 0.5
    %v29 = vtanh.pop %v28
    %v30 = vsub.f32 1.0, %v29
    %v31 = vstv %s27
    %v32 = vmul.f32 %v31, %v30
    %v33 = vlaneseq
    %vm34 = vcmp.ge.s32.totalorder %v33, 0
    %vm35 = vcmp.lt.s32.totalorder %v33, 512
    %vm36 = vmand %vm34, %vm35
    %37 = vst.msk [vmem:[#allocation6] sm:$0xf] %vm36, %v32
    // Predicated region
    $region14: #{tpu_custom_call.1} parent=1 // pred_check
      _
    $region15: #{tpu_custom_call.1} parent=1 // pred_check_branch
      %39 = sbr.rel (0) target = $region17
    $region16: #{tpu_custom_call.1} parent=1 // pred_region
      %s41 = ssub.s32 64, 64
      %42 = vsyncadd [#allocation5], %s41
      %s44 = sshll.u32 [#allocation6], 4
      %s45 = int_to_ptr.vmem [resolvable:$true] %s44
      %47 = dma.vmem_to_hbm [thread:$0]  %s45, 64, %s2, [#allocation5]
    $region17: #{tpu_custom_call.1} parent=1 // pred_fallthru
      _
    // Predicated region
    $region18: #{tpu_custom_call.1} parent=1 // pred_check
      _
    $region19: #{tpu_custom_call.1} parent=1 // pred_check_branch
      %49 = sbr.rel (0) target = $region21
    $region20: #{tpu_custom_call.1} parent=1 // pred_region
      %50 = dma.done [#allocation5], 64
    $region21: #{tpu_custom_call.1} parent=1 // pred_fallthru
      _
    %51 = vsyncpa [#allocation4], 1
    %52 = vsyncpa [#allocation5], 1

</llo_original>
